<compile_context>
chip_gen: v5e
topology: v5e:2x2
jax: 0.10.0
libtpu: 0.0.40
codegen_flags: <defaults>
</compile_context>

<pallas_src>
import functools

import jax
import jax.numpy as jnp
from jax import lax
from jax.experimental import pallas as pl
from jax.experimental.pallas import tpu as pltpu

EPS = 1e-5  # PyTorch GroupNorm default eps
MIB = 1024 * 1024


# ---------------------------------------------------------------------------
# Kernels
# ---------------------------------------------------------------------------
def _single_pass_kernel(x_ref, g_ref, wx_ref, wg_ref, pp_ref, bpsi_ref, out_ref,
                        *, inv_n):
    """Whole sample resident in VMEM: convs, GroupNorm(1), relu, psi, gate in one body."""
    x = x_ref[0]                      # (F_l, S)
    g = g_ref[0]                      # (F_g, S)
    pp = pp_ref[...]                  # (F_int, 7) f32: bx,bg,gx_w,gx_b,gg_w,gg_b,wpsi
    bx, bg = pp[:, 0:1], pp[:, 1:2]
    gam_x, bet_x = pp[:, 2:3], pp[:, 3:4]
    gam_g, bet_g = pp[:, 4:5], pp[:, 5:6]
    wpsi = pp[:, 6:7]

    # 1x1 convs as (C_out, C_in) @ (C_in, S) MXU matmuls with f32 accumulation.
    x1 = jnp.dot(wx_ref[...], x, preferred_element_type=jnp.float32) + bx
    g1 = jnp.dot(wg_ref[...], g, preferred_element_type=jnp.float32) + bg

    # GroupNorm(num_groups=1): stats over all (F_int, S) elements of the sample.
    mu_x = jnp.sum(x1) * inv_n
    var_x = jnp.maximum(jnp.sum(x1 * x1) * inv_n - mu_x * mu_x, 0.0)
    mu_g = jnp.sum(g1) * inv_n
    var_g = jnp.maximum(jnp.sum(g1 * g1) * inv_n - mu_g * mu_g, 0.0)

    scale_x = lax.rsqrt(var_x + EPS) * gam_x      # (F_int, 1)
    scale_g = lax.rsqrt(var_g + EPS) * gam_g
    shift = bet_x + bet_g - mu_x * scale_x - mu_g * scale_g

    act = jnp.maximum(x1 * scale_x + g1 * scale_g + shift, 0.0)      # relu(x1n + g1n)
    psi = jnp.sum(act * wpsi, axis=0, keepdims=True)                  # psi conv: (1, S)
    psi = jax.nn.sigmoid(psi + bpsi_ref[0, 0])
    out_ref[0] = (x.astype(jnp.float32) * psi).astype(out_ref.dtype)


def _two_pass_kernel(x_ref, g_ref, wx_ref, wg_ref, pp_ref, bpsi_ref, out_ref,
                     rsx_ref, rsg_ref, gramx_ref, gramg_ref,
                     sclx_ref, sclg_ref, shift_ref,
                     *, inv_n, S):
    """Grid (N, 2 passes, spatial tiles).  Pass 0: rowsums + Gram matrices (stats via
    linearity, no big temporaries).  Pass 1: convs, normalize with folded per-channel
    scale/shift, relu, psi, sigmoid gate, store."""
    p = pl.program_id(1)
    t = pl.program_id(2)
    tile_s = x_ref.shape[2]

    # -------- pass 0: accumulate rowsum(x), rowsum(g), x@x^T, g@g^T --------
    @pl.when(p == 0)
    def _stats():
        @pl.when(t == 0)
        def _init():
            rsx_ref[...] = jnp.zeros_like(rsx_ref)
            rsg_ref[...] = jnp.zeros_like(rsg_ref)
            gramx_ref[...] = jnp.zeros_like(gramx_ref)
            gramg_ref[...] = jnp.zeros_like(gramg_ref)

        # Mask out-of-range lanes of the (possibly ragged) last tile.
        col = lax.broadcasted_iota(jnp.int32, (1, tile_s), 1)
        mask = col < (S - t * tile_s)
        xm = jnp.where(mask, x_ref[0], 0).astype(jnp.float32)   # (F_l, tS)
        gm = jnp.where(mask, g_ref[0], 0).astype(jnp.float32)   # (F_g, tS)

        rsx_ref[...] += jnp.sum(xm, axis=1, keepdims=True)
        rsg_ref[...] += jnp.sum(gm, axis=1, keepdims=True)
        dn = (((1,), (1,)), ((), ()))     # contract the lane axis of both operands
        gramx_ref[...] += lax.dot_general(xm, xm, dn, preferred_element_type=jnp.float32)
        gramg_ref[...] += lax.dot_general(gm, gm, dn, preferred_element_type=jnp.float32)

    # -------- pass 1: finalize coefficients once, then normalize + gate --------
    @pl.when(p == 1)
    def _apply():
        pp = pp_ref[...]                  # (F_int, 7) f32
        bx, bg = pp[:, 0:1], pp[:, 1:2]
        gam_x, bet_x = pp[:, 2:3], pp[:, 3:4]
        gam_g, bet_g = pp[:, 4:5], pp[:, 5:6]
        wpsi = pp[:, 6:7]

        @pl.when(t == 0)
        def _finalize_stats():
            wx32 = wx_ref[...].astype(jnp.float32)    # (F_int, F_l)
            wg32 = wg_ref[...].astype(jnp.float32)    # (F_int, F_g)
            wx_rs = jnp.dot(wx32, rsx_ref[...], preferred_element_type=jnp.float32)
            wg_rs = jnp.dot(wg32, rsg_ref[...], preferred_element_type=jnp.float32)
            wx_gram = jnp.dot(wx32, gramx_ref[...], preferred_element_type=jnp.float32)
            wg_gram = jnp.dot(wg32, gramg_ref[...], preferred_element_type=jnp.float32)
            sf = float(S)
            # Analytic sums of x1 = Wx@x + bx (and g1) over all (F_int, S) elements.
            sum_x1 = jnp.sum(wx_rs) + sf * jnp.sum(bx)
            sum_g1 = jnp.sum(wg_rs) + sf * jnp.sum(bg)
            ssq_x1 = jnp.sum(wx_gram * wx32) + 2.0 * jnp.sum(bx * wx_rs) + sf * jnp.sum(bx * bx)
            ssq_g1 = jnp.sum(wg_gram * wg32) + 2.0 * jnp.sum(bg * wg_rs) + sf * jnp.sum(bg * bg)

            mu_x = sum_x1 * inv_n
            var_x = jnp.maximum(ssq_x1 * inv_n - mu_x * mu_x, 0.0)
            mu_g = sum_g1 * inv_n
            var_g = jnp.maximum(ssq_g1 * inv_n - mu_g * mu_g, 0.0)
            scl_x = lax.rsqrt(var_x + EPS) * gam_x
            scl_g = lax.rsqrt(var_g + EPS) * gam_g
            sclx_ref[...] = scl_x
            sclg_ref[...] = scl_g
            # Conv biases folded into the per-channel shift (no bias add per element).
            shift_ref[...] = (bx - mu_x) * scl_x + bet_x + (bg - mu_g) * scl_g + bet_g

        x = x_ref[0]
        g = g_ref[0]
        x1 = jnp.dot(wx_ref[...], x, preferred_element_type=jnp.float32)
        g1 = jnp.dot(wg_ref[...], g, preferred_element_type=jnp.float32)
        act = jnp.maximum(x1 * sclx_ref[...] + g1 * sclg_ref[...] + shift_ref[...], 0.0)
        psi = jnp.sum(act * wpsi, axis=0, keepdims=True)              # (1, tS)
        psi = jax.nn.sigmoid(psi + bpsi_ref[0, 0])
        # OOB lanes of a ragged last tile are dropped on the store.
        out_ref[0] = (x.astype(jnp.float32) * psi).astype(out_ref.dtype)


# ---------------------------------------------------------------------------
# Wrapper
# ---------------------------------------------------------------------------
def _auto_vmem_limit_bytes():
    cap = 64 * MIB  # conservative default (v7x per-TC size) if the query fails
    try:
        info = pltpu.get_tpu_info()
        cap = int(getattr(info, "vmem_capacity_bytes", cap)) or cap
    except Exception:
        pass
    # Leave headroom for compiler-internal scratch: ~96 MiB on v5e/v6e, ~48 MiB on v7x.
    return min((cap * 3) // 4, 112 * MIB)


def attention_gate(x_nchw, g_nchw, params, *, vmem_budget_bytes=None):
    """x: (N, F_l, H, W), g: (N, F_g, H, W) -> (N, F_l, H, W)."""
    N, F_l, H, W = x_nchw.shape
    _, F_g, _, _ = g_nchw.shape
    F_int = params["wx"].shape[0]
    S = H * W

    # NCHW -> (N, C, S): a free reshape; the large S dim lands on the 128-lane axis.
    x = x_nchw.reshape(N, F_l, S)
    g = g_nchw.reshape(N, F_g, S)

    vmem_limit = _auto_vmem_limit_bytes()
    budget = vmem_budget_bytes if vmem_budget_bytes is not None else vmem_limit - 8 * MIB

    wx = params["wx"].astype(x.dtype)
    wg = params["wg"].astype(x.dtype)
    # Pack the tiny per-channel params into a single VMEM-resident f32 operand.
    pp = jnp.concatenate(
        [params[k].reshape(F_int, 1).astype(jnp.float32)
         for k in ("bx", "bg", "gx_w", "gx_b", "gg_w", "gg_b", "wpsi")], axis=1)
    bpsi = params["bpsi"].reshape(1, 1).astype(jnp.float32)

    itemsize = jnp.dtype(x.dtype).itemsize
    io_per_col = 2 * itemsize * (2 * F_l + F_g)   # double-buffered x, g, out blocks
    f32_per_col = 32 * F_int                      # ~8 f32 (F_int, cols) intermediates
    per_col = io_per_col + f32_per_col

    const2 = lambda shape: pl.BlockSpec(shape, lambda *_: (0, 0))  # VMEM-resident params
    inv_n = 1.0 / float(F_int * S)

    if per_col * S + MIB <= budget:
        # ---- single-pass fast path: whole sample fits in VMEM ----
        kernel = functools.partial(_single_pass_kernel, inv_n=inv_n)
        out = pl.pallas_call(
            kernel,
            out_shape=jax.ShapeDtypeStruct((N, F_l, S), x.dtype),
            grid_spec=pltpu.PrefetchScalarGridSpec(
                num_scalar_prefetch=0,
                grid=(N,),
                in_specs=[
                    pl.BlockSpec((1, F_l, S), lambda b: (b, 0, 0)),
                    pl.BlockSpec((1, F_g, S), lambda b: (b, 0, 0)),
                    const2((F_int, F_l)),
                    const2((F_int, F_g)),
                    const2((F_int, 7)),
                    const2((1, 1)),
                ],
                out_specs=pl.BlockSpec((1, F_l, S), lambda b: (b, 0, 0)),
            ),
            compiler_params=pltpu.CompilerParams(
                dimension_semantics=("parallel",),
                vmem_limit_bytes=vmem_limit),
        )(x, g, wx, wg, pp, bpsi)
    else:
        # ---- two-pass fallback: tile the spatial axis, stats via rowsum/Gram ----
        tile_s = min(max((budget // per_col) // 128, 1) * 128, pl.cdiv(S, 128) * 128)
        num_tiles = pl.cdiv(S, tile_s)
        kernel = functools.partial(_two_pass_kernel, inv_n=inv_n, S=S)
        out = pl.pallas_call(
            kernel,
            out_shape=jax.ShapeDtypeStruct((N, F_l, S), x.dtype),
            grid_spec=pltpu.PrefetchScalarGridSpec(
                num_scalar_prefetch=0,
                grid=(N, 2, num_tiles),   # batch, pass (stats / apply), spatial tile
                in_specs=[
                    pl.BlockSpec((1, F_l, tile_s), lambda b, p, t: (b, 0, t)),
                    pl.BlockSpec((1, F_g, tile_s), lambda b, p, t: (b, 0, t)),
                    const2((F_int, F_l)),
                    const2((F_int, F_g)),
                    const2((F_int, 7)),
                    const2((1, 1)),
                ],
                # Pass 0 pins the (unwritten) block; pass 1 walks tiles -> one writeback each.
                out_specs=pl.BlockSpec((1, F_l, tile_s), lambda b, p, t: (b, 0, t * p)),
                scratch_shapes=[
                    pltpu.VMEM((F_l, 1), jnp.float32),       # rowsum(x)
                    pltpu.VMEM((F_g, 1), jnp.float32),       # rowsum(g)
                    pltpu.VMEM((F_l, F_l), jnp.float32),     # x @ x^T
                    pltpu.VMEM((F_g, F_g), jnp.float32),     # g @ g^T
                    pltpu.VMEM((F_int, 1), jnp.float32),     # scale_x
                    pltpu.VMEM((F_int, 1), jnp.float32),     # scale_g
                    pltpu.VMEM((F_int, 1), jnp.float32),     # combined shift
                ],
            ),
            compiler_params=pltpu.CompilerParams(
                dimension_semantics=("parallel", "arbitrary", "arbitrary"),
                vmem_limit_bytes=vmem_limit),
        )(x, g, wx, wg, pp, bpsi)

    return out.reshape(N, F_l, H, W)


# ---------------------------------------------------------------------------
# Pure-JAX reference and test harness
# ---------------------------------------------------------------------------
def _reference(x_nchw, g_nchw, params):
    N, F_l, H, W = x_nchw.shape
    _, F_g, _, _ = g_nchw.shape
    S = H * W
    x = x_nchw.reshape(N, F_l, S).astype(jnp.float32)
    g = g_nchw.reshape(N, F_g, S).astype(jnp.float32)

    def conv1x1(w, b, t):  # w: (Cout, Cin), b: (Cout, 1), t: (N, Cin, S)
        return jnp.einsum("oc,ncs->nos", w.astype(jnp.float32), t) + b.astype(jnp.float32)

    def gn1(t, gamma, beta):
        mu = jnp.mean(t, axis=(1, 2), keepdims=True)
        var = jnp.mean((t - mu) ** 2, axis=(1, 2), keepdims=True)
        return (t - mu) / jnp.sqrt(var + EPS) * gamma.astype(jnp.float32) \
            + beta.astype(jnp.float32)

    x1 = gn1(conv1x1(params["wx"], params["bx"], x), params["gx_w"], params["gx_b"])
    g1 = gn1(conv1x1(params["wg"], params["bg"], g), params["gg_w"], params["gg_b"])
    act = jnp.maximum(x1 + g1, 0.0)
    psi = jax.nn.sigmoid(
        jnp.sum(act * params["wpsi"].astype(jnp.float32), axis=1, keepdims=True)
        + params["bpsi"].astype(jnp.float32)[0, 0])
    out = (x * psi).astype(x_nchw.dtype)
    return out.reshape(N, F_l, H, W)


def make_params(key, F_g, F_l, F_int, dtype=jnp.float32):
    ks = jax.random.split(key, 6)
    scale = 0.1
    return {
        # Weights stored in PyTorch Conv2d (C_out, C_in) orientation.
        "wx":   (scale * jax.random.normal(ks[0], (F_int, F_l))).astype(dtype),
        "bx":   (scale * jax.random.normal(ks[1], (F_int, 1))).astype(dtype),
        "gx_w": jnp.ones((F_int, 1), dtype),   # GroupNorm default affine init
        "gx_b": jnp.zeros((F_int, 1), dtype),
        "wg":   (scale * jax.random.normal(ks[2], (F_int, F_g))).astype(dtype),
        "bg":   (scale * jax.random.normal(ks[3], (F_int, 1))).astype(dtype),
        "gg_w": jnp.ones((F_int, 1), dtype),
        "gg_b": jnp.zeros((F_int, 1), dtype),
        "wpsi": (scale * jax.random.normal(ks[4], (F_int, 1))).astype(dtype),
        "bpsi": (scale * jax.random.normal(ks[5], (1, 1))).astype(dtype),
    }


if __name__ == "__main__":
    key = jax.random.PRNGKey(0)

    # Test 1: module-spec shapes -> single-pass fast path (sample fits in VMEM).
    k1x, k1g, k1p, key = jax.random.split(key, 4)
    N, F_g, F_l, F_int, H, W = 2, 4, 4, 8, 16, 16
    x = jax.random.normal(k1x, (N, F_l, H, W), jnp.float32)
    g = jax.random.normal(k1g, (N, F_g, H, W), jnp.float32)
    params = make_params(k1p, F_g, F_l, F_int)
    out = jax.block_until_ready(attention_gate(x, g, params))
    ref = _reference(x, g, params)
    assert out.shape == x.shape
    assert jnp.allclose(out, ref, atol=1e-4, rtol=1e-4), "mismatch (test 1, single-pass)"

    # Test 2: force the two-pass path with a ragged last spatial tile
    # (S = 400 -> tiles of 128, 128, 128, 16 valid lanes).
    k2x, k2g, k2p, key = jax.random.split(key, 4)
    N2, F_g2, F_l2, F_int2, H2, W2 = 1, 3, 5, 6, 20, 20
    x2 = jax.random.normal(k2x, (N2, F_l2, H2, W2), jnp.float32)
    g2 = jax.random.normal(k2g, (N2, F_g2, H2, W2), jnp.float32)
    params2 = make_params(k2p, F_g2, F_l2, F_int2)
    out2 = jax.block_until_ready(
        attention_gate(x2, g2, params2, vmem_budget_bytes=64 * 1024))
    ref2 = _reference(x2, g2, params2)
    assert jnp.allclose(out2, ref2, atol=1e-4, rtol=1e-4), "mismatch (test 2, ragged two-pass)"

    # Test 3: two-pass path with exactly-dividing tiles and N > 1 (per-sample stat reset).
    k3x, k3g, k3p = jax.random.split(key, 3)
    N3, F_g3, F_l3, F_int3, H3, W3 = 2, 4, 4, 8, 32, 32
    x3 = jax.random.normal(k3x, (N3, F_l3, H3, W3), jnp.float32)
    g3 = jax.random.normal(k3g, (N3, F_g3, H3, W3), jnp.float32)
    params3 = make_params(k3p, F_g3, F_l3, F_int3)
    out3 = jax.block_until_ready(
        attention_gate(x3, g3, params3, vmem_budget_bytes=128 * 1024))
    ref3 = _reference(x3, g3, params3)
    assert jnp.allclose(out3, ref3, atol=1e-4, rtol=1e-4), "mismatch (test 3, two-pass)"

    print("KERNEL_OK")
</pallas_src>

<mosaic_0001>
module attributes {stable_mosaic.version = 11 : i64} {
  func.func @_single_pass_kernel(%arg0: i32, %arg1: memref<1x4x256xf32, #tpu.memory_space<vmem>>, %arg2: memref<1x4x256xf32, #tpu.memory_space<vmem>>, %arg3: memref<8x4xf32, #tpu.memory_space<vmem>>, %arg4: memref<8x4xf32, #tpu.memory_space<vmem>>, %arg5: memref<8x7xf32, #tpu.memory_space<vmem>>, %arg6: memref<1x1xf32, #tpu.memory_space<vmem>>, %arg7: memref<1x4x256xf32, #tpu.memory_space<vmem>>) attributes {dimension_semantics = [#tpu.dimension_semantics<parallel>], iteration_bounds = array<i64: 2>, scalar_prefetch = 0 : i64, scratch_operands = 0 : i64, tpu.core_type = #tpu.core_type<tc>, window_params = [{transform_indices = @transform_0, window_bounds = array<i64: 1, 4, 256>}, {transform_indices = @transform_1, window_bounds = array<i64: 1, 4, 256>}, {pipeline_mode = #tpu.pipeline_mode<synchronous>, transform_indices = @transform_2, window_bounds = array<i64: 8, 4>}, {pipeline_mode = #tpu.pipeline_mode<synchronous>, transform_indices = @transform_3, window_bounds = array<i64: 8, 4>}, {pipeline_mode = #tpu.pipeline_mode<synchronous>, transform_indices = @transform_4, window_bounds = array<i64: 8, 7>}, {pipeline_mode = #tpu.pipeline_mode<synchronous>, transform_indices = @transform_5, window_bounds = array<i64: 1, 1>}, {transform_indices = @transform_6, window_bounds = array<i64: 1, 4, 256>}]} {
    %c0 = arith.constant 0 : index
    %c0_0 = arith.constant 0 : index
    %c0_1 = arith.constant 0 : index
    %0 = vector.load %arg1[%c0, %c0_0, %c0_1] : memref<1x4x256xf32, #tpu.memory_space<vmem>>, vector<1x4x256xf32>
    %1 = vector.shape_cast %0 : vector<1x4x256xf32> to vector<4x256xf32>
    %c0_2 = arith.constant 0 : index
    %c0_3 = arith.constant 0 : index
    %c0_4 = arith.constant 0 : index
    %2 = vector.load %arg2[%c0_2, %c0_3, %c0_4] : memref<1x4x256xf32, #tpu.memory_space<vmem>>, vector<1x4x256xf32>
    %3 = vector.shape_cast %2 : vector<1x4x256xf32> to vector<4x256xf32>
    %c0_5 = arith.constant 0 : index
    %c0_6 = arith.constant 0 : index
    %4 = vector.load %arg5[%c0_5, %c0_6] : memref<8x7xf32, #tpu.memory_space<vmem>>, vector<8x7xf32>
    %5 = vector.extract_strided_slice %4 {offsets = [0, 0], sizes = [8, 1], strides = [1, 1]} : vector<8x7xf32> to vector<8x1xf32>
    %6 = vector.extract_strided_slice %4 {offsets = [0, 1], sizes = [8, 1], strides = [1, 1]} : vector<8x7xf32> to vector<8x1xf32>
    %7 = vector.extract_strided_slice %4 {offsets = [0, 2], sizes = [8, 1], strides = [1, 1]} : vector<8x7xf32> to vector<8x1xf32>
    %8 = vector.extract_strided_slice %4 {offsets = [0, 3], sizes = [8, 1], strides = [1, 1]} : vector<8x7xf32> to vector<8x1xf32>
    %9 = vector.extract_strided_slice %4 {offsets = [0, 4], sizes = [8, 1], strides = [1, 1]} : vector<8x7xf32> to vector<8x1xf32>
    %10 = vector.extract_strided_slice %4 {offsets = [0, 5], sizes = [8, 1], strides = [1, 1]} : vector<8x7xf32> to vector<8x1xf32>
    %11 = vector.extract_strided_slice %4 {offsets = [0, 6], sizes = [8, 1], strides = [1, 1]} : vector<8x7xf32> to vector<8x1xf32>
    %c0_7 = arith.constant 0 : index
    %c0_8 = arith.constant 0 : index
    %12 = vector.load %arg3[%c0_7, %c0_8] : memref<8x4xf32, #tpu.memory_space<vmem>>, vector<8x4xf32>
    %cst = arith.constant dense<0.000000e+00> : vector<8x256xf32>
    %13 = tpu.matmul %12, %1, %cst {dimension_numbers = #tpu.dot_dimension_numbers<[1], [0], [0], [1], [0, 0, 1, 1], [], []>} : vector<8x4xf32>, vector<4x256xf32>, vector<8x256xf32> -> vector<8x256xf32>
    %14 = vector.broadcast %5 : vector<8x1xf32> to vector<8x256xf32>
    %15 = arith.addf %13, %14 : vector<8x256xf32>
    %c0_9 = arith.constant 0 : index
    %c0_10 = arith.constant 0 : index
    %16 = vector.load %arg4[%c0_9, %c0_10] : memref<8x4xf32, #tpu.memory_space<vmem>>, vector<8x4xf32>
    %cst_11 = arith.constant dense<0.000000e+00> : vector<8x256xf32>
    %17 = tpu.matmul %16, %3, %cst_11 {dimension_numbers = #tpu.dot_dimension_numbers<[1], [0], [0], [1], [0, 0, 1, 1], [], []>} : vector<8x4xf32>, vector<4x256xf32>, vector<8x256xf32> -> vector<8x256xf32>
    %18 = vector.broadcast %6 : vector<8x1xf32> to vector<8x256xf32>
    %19 = arith.addf %17, %18 : vector<8x256xf32>
    %20 = vector.shape_cast %15 : vector<8x256xf32> to vector<1x8x256xf32>
    %cst_12 = arith.constant dense<0.000000e+00> : vector<1xf32>
    %21 = vector.multi_reduction <add>, %20, %cst_12 [1, 2] : vector<1x8x256xf32> to vector<1xf32>
    %22 = vector.shape_cast %21 : vector<1xf32> to vector<1x1x1xf32>
    %23 = vector.extract %22[0, 0, 0] : f32 from vector<1x1x1xf32>
    %cst_13 = arith.constant 4.8828125E-4 : f32
    %24 = arith.mulf %23, %cst_13 : f32
    %25 = arith.mulf %15, %15 : vector<8x256xf32>
    %26 = vector.shape_cast %25 : vector<8x256xf32> to vector<1x8x256xf32>
    %cst_14 = arith.constant dense<0.000000e+00> : vector<1xf32>
    %27 = vector.multi_reduction <add>, %26, %cst_14 [1, 2] : vector<1x8x256xf32> to vector<1xf32>
    %28 = vector.shape_cast %27 : vector<1xf32> to vector<1x1x1xf32>
    %29 = vector.extract %28[0, 0, 0] : f32 from vector<1x1x1xf32>
    %cst_15 = arith.constant 4.8828125E-4 : f32
    %30 = arith.mulf %29, %cst_15 : f32
    %31 = arith.mulf %24, %24 : f32
    %32 = arith.subf %30, %31 : f32
    %cst_16 = arith.constant 0.000000e+00 : f32
    %33 = arith.maximumf %32, %cst_16 : f32
    %34 = vector.shape_cast %19 : vector<8x256xf32> to vector<1x8x256xf32>
    %cst_17 = arith.constant dense<0.000000e+00> : vector<1xf32>
    %35 = vector.multi_reduction <add>, %34, %cst_17 [1, 2] : vector<1x8x256xf32> to vector<1xf32>
    %36 = vector.shape_cast %35 : vector<1xf32> to vector<1x1x1xf32>
    %37 = vector.extract %36[0, 0, 0] : f32 from vector<1x1x1xf32>
    %cst_18 = arith.constant 4.8828125E-4 : f32
    %38 = arith.mulf %37, %cst_18 : f32
    %39 = arith.mulf %19, %19 : vector<8x256xf32>
    %40 = vector.shape_cast %39 : vector<8x256xf32> to vector<1x8x256xf32>
    %cst_19 = arith.constant dense<0.000000e+00> : vector<1xf32>
    %41 = vector.multi_reduction <add>, %40, %cst_19 [1, 2] : vector<1x8x256xf32> to vector<1xf32>
    %42 = vector.shape_cast %41 : vector<1xf32> to vector<1x1x1xf32>
    %43 = vector.extract %42[0, 0, 0] : f32 from vector<1x1x1xf32>
    %cst_20 = arith.constant 4.8828125E-4 : f32
    %44 = arith.mulf %43, %cst_20 : f32
    %45 = arith.mulf %38, %38 : f32
    %46 = arith.subf %44, %45 : f32
    %cst_21 = arith.constant 0.000000e+00 : f32
    %47 = arith.maximumf %46, %cst_21 : f32
    %cst_22 = arith.constant 9.99999974E-6 : f32
    %48 = arith.addf %33, %cst_22 : f32
    %49 = math.rsqrt %48 : f32
    %50 = vector.broadcast %49 : f32 to vector<8x1xf32>
    %51 = arith.mulf %50, %7 : vector<8x1xf32>
    %cst_23 = arith.constant 9.99999974E-6 : f32
    %52 = arith.addf %47, %cst_23 : f32
    %53 = math.rsqrt %52 : f32
    %54 = vector.broadcast %53 : f32 to vector<8x1xf32>
    %55 = arith.mulf %54, %9 : vector<8x1xf32>
    %56 = arith.addf %8, %10 : vector<8x1xf32>
    %57 = vector.broadcast %24 : f32 to vector<8x1xf32>
    %58 = arith.mulf %57, %51 : vector<8x1xf32>
    %59 = arith.subf %56, %58 : vector<8x1xf32>
    %60 = vector.broadcast %38 : f32 to vector<8x1xf32>
    %61 = arith.mulf %60, %55 : vector<8x1xf32>
    %62 = arith.subf %59, %61 : vector<8x1xf32>
    %63 = vector.broadcast %51 : vector<8x1xf32> to vector<8x256xf32>
    %64 = arith.mulf %15, %63 : vector<8x256xf32>
    %65 = vector.broadcast %55 : vector<8x1xf32> to vector<8x256xf32>
    %66 = arith.mulf %19, %65 : vector<8x256xf32>
    %67 = arith.addf %64, %66 : vector<8x256xf32>
    %68 = vector.broadcast %62 : vector<8x1xf32> to vector<8x256xf32>
    %69 = arith.addf %67, %68 : vector<8x256xf32>
    %cst_24 = arith.constant 0.000000e+00 : f32
    %70 = vector.broadcast %cst_24 : f32 to vector<8x256xf32>
    %71 = arith.maximumf %69, %70 : vector<8x256xf32>
    %72 = vector.broadcast %11 : vector<8x1xf32> to vector<8x256xf32>
    %73 = arith.mulf %71, %72 : vector<8x256xf32>
    %cst_25 = arith.constant dense<0.000000e+00> : vector<256xf32>
    %74 = vector.multi_reduction <add>, %73, %cst_25 [0] : vector<8x256xf32> to vector<256xf32>
    %75 = vector.shape_cast %74 : vector<256xf32> to vector<1x256xf32>
    %c0_26 = arith.constant 0 : index
    %c0_27 = arith.constant 0 : index
    %76 = vector.load %arg6[%c0_26, %c0_27] : memref<1x1xf32, #tpu.memory_space<vmem>>, vector<1x1xf32>
    %77 = vector.extract %76[0, 0] : f32 from vector<1x1xf32>
    %78 = vector.broadcast %77 : f32 to vector<1x256xf32>
    %79 = arith.addf %75, %78 : vector<1x256xf32>
    %80 = arith.negf %79 : vector<1x256xf32>
    %81 = math.exp %80 : vector<1x256xf32>
    %cst_28 = arith.constant 1.000000e+00 : f32
    %82 = vector.broadcast %cst_28 : f32 to vector<1x256xf32>
    %83 = arith.addf %82, %81 : vector<1x256xf32>
    %84 = arith.divf %82, %83 : vector<1x256xf32>
    %85 = vector.broadcast %84 : vector<1x256xf32> to vector<4x256xf32>
    %86 = arith.mulf %1, %85 : vector<4x256xf32>
    %c0_29 = arith.constant 0 : index
    %c0_30 = arith.constant 0 : index
    %c0_31 = arith.constant 0 : index
    %87 = vector.load %arg7[%c0_29, %c0_30, %c0_31] : memref<1x4x256xf32, #tpu.memory_space<vmem>>, vector<1x4x256xf32>
    %88 = vector.shape_cast %87 : vector<1x4x256xf32> to vector<4x256xf32>
    %89 = vector.shape_cast %86 : vector<4x256xf32> to vector<1x4x256xf32>
    tpu.vector_store %arg7[%c0_29, %c0_30, %c0_31], %89 {strides = array<i32>} : memref<1x4x256xf32, #tpu.memory_space<vmem>>, vector<1x4x256xf32>,
    return
  }
  func.func @transform_0(%arg0: i32) -> (i32, i32, i32) {
    %c0_i32 = arith.constant 0 : i32
    %c0_i32_0 = arith.constant 0 : i32
    %c0_i32_1 = arith.constant 0 : i32
    return %arg0, %c0_i32, %c0_i32_0 : i32, i32, i32
  }
  func.func @transform_1(%arg0: i32) -> (i32, i32, i32) {
    %c0_i32 = arith.constant 0 : i32
    %c0_i32_0 = arith.constant 0 : i32
    %c0_i32_1 = arith.constant 0 : i32
    return %arg0, %c0_i32, %c0_i32_0 : i32, i32, i32
  }
  func.func @transform_2(%arg0: i32) -> (i32, i32) {
    %c0_i32 = arith.constant 0 : i32
    %c0_i32_0 = arith.constant 0 : i32
    %c0_i32_1 = arith.constant 0 : i32
    return %c0_i32, %c0_i32_0 : i32, i32
  }
  func.func @transform_3(%arg0: i32) -> (i32, i32) {
    %c0_i32 = arith.constant 0 : i32
    %c0_i32_0 = arith.constant 0 : i32
    %c0_i32_1 = arith.constant 0 : i32
    return %c0_i32, %c0_i32_0 : i32, i32
  }
  func.func @transform_4(%arg0: i32) -> (i32, i32) {
    %c0_i32 = arith.constant 0 : i32
    %c0_i32_0 = arith.constant 0 : i32
    %c0_i32_1 = arith.constant 0 : i32
    return %c0_i32, %c0_i32_0 : i32, i32
  }
  func.func @transform_5(%arg0: i32) -> (i32, i32) {
    %c0_i32 = arith.constant 0 : i32
    %c0_i32_0 = arith.constant 0 : i32
    %c0_i32_1 = arith.constant 0 : i32
    return %c0_i32, %c0_i32_0 : i32, i32
  }
  func.func @transform_6(%arg0: i32) -> (i32, i32, i32) {
    %c0_i32 = arith.constant 0 : i32
    %c0_i32_0 = arith.constant 0 : i32
    %c0_i32_1 = arith.constant 0 : i32
    return %arg0, %c0_i32, %c0_i32_0 : i32, i32, i32
  }
}

</mosaic_0001>

<llo_original>
// kernel: tpu_custom_call.1
$region0: #{tpu_custom_call.1}
  #allocation0 [shape = 'u32[]', space=smem, size = 0x4, offset = 0x4, fixed_abs, tag = 'smem constant byte address 0x4 - core index']
  #allocation1 [shape = 'u32[72,128]{1,0:T(1,128)}', space=vmem, size = 0x9000, scoped, tag = 'internal scratch']
  #allocation2 [shape = 'f32[1,1]{1,0:T(1,128)S(1)}', space=vmem, size = 0x200, scoped, tag = 'scoped memory for tpu_custom_call.1']
  %s0 = inlined_call_operand.vmem [shape: f32[2,4,256], index: 0, kind: input, shape index: {}]
  %s1 = inlined_call_operand.hbm [shape: f32[2,4,256], index: 1, kind: input, shape index: {}]
  %s2 = inlined_call_operand.vmem [shape: f32[8,4], index: 2, kind: input, shape index: {}]
  %s3 = inlined_call_operand.vmem [shape: f32[8,4], index: 3, kind: input, shape index: {}]
  %s4 = inlined_call_operand.vmem [shape: f32[8,7], index: 4, kind: input, shape index: {}]
  %s5 = inlined_call_operand.<no memory space> [shape: f32[1,1], index: 5, kind: input, shape index: {}]
  %s6 = inlined_call_operand.hbm [shape: f32[2,4,256], index: 6, kind: output, shape index: {}]
  %s7 = sld [smem:[#allocation0]]
  $region61: #{tpu_custom_call.1} parent=0
    _
  %s9 = ssub.s32 1, %s7
  %s10 = scalar_select 0, %s9, %s7
  %v11 = vstv %s5
  %12 = vst [vmem:[#allocation2] sm:$0x1] %v11
  $region1: #{tpu_custom_call.1} parent=0
    #allocation3 [shape = 'u8[8192]{0}', space=vmem, size = 0x2000, scoped, tag = 'input window, operand 1']
    #allocation4 [shape = 's32[2]{0}', space=sflag, size = 0x8, scoped, tag = 'scoped memory for tpu_custom_call.1']
    #allocation5 [shape = 's32[2]{0}', space=sflag, size = 0x8, scoped, tag = 'scoped memory for tpu_custom_call.1']
    #allocation6 [shape = 'u8[8192]{0}', space=vmem, size = 0x2000, scoped, tag = 'output window, operand 0']
    %13 = vsyncpa [#allocation4], 0
    %s14 = scalar_lea.sflag [#allocation4], 1
    %15 = vsyncpa %s14, 0
    %16 = vsyncpa [#allocation5], 0
    %s17 = scalar_lea.sflag [#allocation5], 1
    %18 = vsyncpa %s17, 0
    loop: start=0, step=1, limit=4
    $region2: #{tpu_custom_call.1} parent=1 // loop_pre_header
      _
    $region3: #{tpu_custom_call.1} parent=1 // loop_header
      %s20 = sphi 0, %s24
      %p21 = scmp.ge.s32.totalorder %s20, 4
      %s30 = sphi 0, %s32
      %s33 = sphi 0, %s30
      %s34 = sphi 0, %s33
      %s50 = sphi 0, %s34
      %s56 = sphi 0, %s58
      %s59 = sphi 0, %s56
      %s60 = sphi 0, %s59
      %s76 = sphi 0, %s60
      %s80 = sphi 0, %s80
      %s82 = sphi 0, %s80
      %s83 = sphi 0, %s82
      %s97 = sphi 0, %s83
      %s101 = sphi 0, %s101
      %s103 = sphi 0, %s101
      %s104 = sphi 0, %s103
      %s118 = sphi 0, %s104
      %s122 = sphi 0, %s122
      %s124 = sphi 0, %s122
      %s125 = sphi 0, %s124
      %s139 = sphi 0, %s125
      %s143 = sphi 0, %s143
      %s145 = sphi 0, %s143
      %s146 = sphi 0, %s145
      %s160 = sphi 0, %s146
      %s166 = sphi 0, %s168
      %s169 = sphi 0, %s166
      %s170 = sphi 0, %s169
      %s186 = sphi 0, %s170
    $region4: #{tpu_custom_call.1} parent=1 // loop_header_branch
      %23 = sbr.rel (%p21) target = $region8
    $region5: #{tpu_custom_call.1} parent=1 // loop_body
      %s25 = ssub.s32 %s20, 1
      %s26 = ssub.s32 %s20, 2
      %s27 = sadd.s32 %s20, 1
      %s28 = ssub.s32 %s20, %s27
      %p29 = scmp.eq.s32.totalorder %s28, 0
      %s31 = sadd.s32 %s30, 1
      %s32 = scalar_select %p29, %s30, %s31
      %p35 = pneg %p29
      %p36 = scmp.eq.s32.totalorder %s20, 1
      %p37 = por %p35, %p36
      %p38 = scmp.ne.s32.totalorder %s30, %s33
      %p39 = scmp.eq.s32.totalorder %s20, 0
      %p40 = por %p38, %p39
      %p41 = scmp.ne.s32.totalorder %s30, %s33
      %p42 = scmp.eq.s32.totalorder %s25, 1
      %p43 = por %p41, %p42
      %p44 = scmp.ne.s32.totalorder %s33, %s34
      %p45 = scmp.eq.s32.totalorder %s25, 0
      %p46 = por %p44, %p45
      %p47 = scmp.ne.s32.totalorder %s33, %s34
      %p48 = scmp.eq.s32.totalorder %s26, 1
      %p49 = por %p47, %p48
      %p51 = scmp.ne.s32.totalorder %s34, %s50
      %p52 = scmp.eq.s32.totalorder %s26, 0
      %p53 = por %p51, %p52
      %s54 = ssub.s32 %s20, %s27
      %p55 = scmp.eq.s32.totalorder %s54, 0
      %s57 = sadd.s32 %s56, 1
      %s58 = scalar_select %p55, %s56, %s57
      %p61 = pneg %p55
      %p62 = scmp.eq.s32.totalorder %s20, 1
      %p63 = por %p61, %p62
      %p64 = scmp.ne.s32.totalorder %s56, %s59
      %p65 = scmp.eq.s32.totalorder %s20, 0
      %p66 = por %p64, %p65
      %p67 = scmp.ne.s32.totalorder %s56, %s59
      %p68 = scmp.eq.s32.totalorder %s25, 1
      %p69 = por %p67, %p68
      %p70 = scmp.ne.s32.totalorder %s59, %s60
      %p71 = scmp.eq.s32.totalorder %s25, 0
      %p72 = por %p70, %p71
      %p73 = scmp.ne.s32.totalorder %s59, %s60
      %p74 = scmp.eq.s32.totalorder %s26, 1
      %p75 = por %p73, %p74
      %p77 = scmp.ne.s32.totalorder %s60, %s76
      %p78 = scmp.eq.s32.totalorder %s26, 0
      %p79 = por %p77, %p78
      %s81 = sadd.s32 %s80, 1
      %p84 = scmp.eq.s32.totalorder %s20, 1
      %p85 = scmp.ne.s32.totalorder %s80, %s82
      %p86 = scmp.eq.s32.totalorder %s20, 0
      %p87 = por %p85, %p86
      %p88 = scmp.ne.s32.totalorder %s80, %s82
      %p89 = scmp.eq.s32.totalorder %s25, 1
      %p90 = por %p88, %p89
      %p91 = scmp.ne.s32.totalorder %s82, %s83
      %p92 = scmp.eq.s32.totalorder %s25, 0
      %p93 = por %p91, %p92
      %p94 = scmp.ne.s32.totalorder %s82, %s83
      %p95 = scmp.eq.s32.totalorder %s26, 1
      %p96 = por %p94, %p95
      %p98 = scmp.ne.s32.totalorder %s83, %s97
      %p99 = scmp.eq.s32.totalorder %s26, 0
      %p100 = por %p98, %p99
      %s102 = sadd.s32 %s101, 1
      %p105 = scmp.eq.s32.totalorder %s20, 1
      %p106 = scmp.ne.s32.totalorder %s101, %s103
      %p107 = scmp.eq.s32.totalorder %s20, 0
      %p108 = por %p106, %p107
      %p109 = scmp.ne.s32.totalorder %s101, %s103
      %p110 = scmp.eq.s32.totalorder %s25, 1
      %p111 = por %p109, %p110
      %p112 = scmp.ne.s32.totalorder %s103, %s104
      %p113 = scmp.eq.s32.totalorder %s25, 0
      %p114 = por %p112, %p113
      %p115 = scmp.ne.s32.totalorder %s103, %s104
      %p116 = scmp.eq.s32.totalorder %s26, 1
      %p117 = por %p115, %p116
      %p119 = scmp.ne.s32.totalorder %s104, %s118
      %p120 = scmp.eq.s32.totalorder %s26, 0
      %p121 = por %p119, %p120
      %s123 = sadd.s32 %s122, 1
      %p126 = scmp.eq.s32.totalorder %s20, 1
      %p127 = scmp.ne.s32.totalorder %s122, %s124
      %p128 = scmp.eq.s32.totalorder %s20, 0
      %p129 = por %p127, %p128
      %p130 = scmp.ne.s32.totalorder %s122, %s124
      %p131 = scmp.eq.s32.totalorder %s25, 1
      %p132 = por %p130, %p131
      %p133 = scmp.ne.s32.totalorder %s124, %s125
      %p134 = scmp.eq.s32.totalorder %s25, 0
      %p135 = por %p133, %p134
      %p136 = scmp.ne.s32.totalorder %s124, %s125
      %p137 = scmp.eq.s32.totalorder %s26, 1
      %p138 = por %p136, %p137
      %p140 = scmp.ne.s32.totalorder %s125, %s139
      %p141 = scmp.eq.s32.totalorder %s26, 0
      %p142 = por %p140, %p141
      %s144 = sadd.s32 %s143, 1
      %p147 = scmp.eq.s32.totalorder %s20, 1
      %p148 = scmp.ne.s32.totalorder %s143, %s145
      %p149 = scmp.eq.s32.totalorder %s20, 0
      %p150 = por %p148, %p149
      %p151 = scmp.ne.s32.totalorder %s143, %s145
      %p152 = scmp.eq.s32.totalorder %s25, 1
      %p153 = por %p151, %p152
      %p154 = scmp.ne.s32.totalorder %s145, %s146
      %p155 = scmp.eq.s32.totalorder %s25, 0
      %p156 = por %p154, %p155
      %p157 = scmp.ne.s32.totalorder %s145, %s146
      %p158 = scmp.eq.s32.totalorder %s26, 1
      %p159 = por %p157, %p158
      %p161 = scmp.ne.s32.totalorder %s146, %s160
      %p162 = scmp.eq.s32.totalorder %s26, 0
      %p163 = por %p161, %p162
      %s164 = ssub.s32 %s20, %s27
      %p165 = scmp.eq.s32.totalorder %s164, 0
      %s167 = sadd.s32 %s166, 1
      %s168 = scalar_select %p165, %s166, %s167
      %p171 = pneg %p165
      %p172 = scmp.eq.s32.totalorder %s20, 1
      %p173 = por %p171, %p172
      %p174 = scmp.ne.s32.totalorder %s166, %s169
      %p175 = scmp.eq.s32.totalorder %s20, 0
      %p176 = por %p174, %p175
      %p177 = scmp.ne.s32.totalorder %s166, %s169
      %p178 = scmp.eq.s32.totalorder %s25, 1
      %p179 = por %p177, %p178
      %p180 = scmp.ne.s32.totalorder %s169, %s170
      %p181 = scmp.eq.s32.totalorder %s25, 0
      %p182 = por %p180, %p181
      %p183 = scmp.ne.s32.totalorder %s169, %s170
      %p184 = scmp.eq.s32.totalorder %s26, 1
      %p185 = por %p183, %p184
      %p187 = scmp.ne.s32.totalorder %s170, %s186
      %p188 = scmp.eq.s32.totalorder %s26, 0
      %p189 = por %p187, %p188
      %p190 = scmp.le.s32.totalorder 1, %s20
      %p191 = scmp.lt.s32.totalorder %s20, 3
      %p192 = pnand %p190, %p191
      %p193 = pneg %p192
      // Predicated region
      $region9: #{tpu_custom_call.1} parent=5 // pred_check
        _
      $region10: #{tpu_custom_call.1} parent=5 // pred_check_branch
        %195 = sbr.rel (%p192) target = $region12
      $region11: #{tpu_custom_call.1} parent=5 // pred_region
        %s196 = ssub.s32 %s20, 1
        // Predicated region
        $region13: #{tpu_custom_call.1} parent=11 // pred_check
          %p197 = pneg %p93
        $region14: #{tpu_custom_call.1} parent=11 // pred_check_branch
          %199 = sbr.rel (%p197) target = $region16
        $region15: #{tpu_custom_call.1} parent=11 // pred_region
          _
        $region16: #{tpu_custom_call.1} parent=11 // pred_fallthru
          _
        // Predicated region
        $region17: #{tpu_custom_call.1} parent=11 // pred_check
          %p200 = pneg %p114
        $region18: #{tpu_custom_call.1} parent=11 // pred_check_branch
          %202 = sbr.rel (%p200) target = $region20
        $region19: #{tpu_custom_call.1} parent=11 // pred_region
          _
        $region20: #{tpu_custom_call.1} parent=11 // pred_fallthru
          _
        // Predicated region
        $region21: #{tpu_custom_call.1} parent=11 // pred_check
          %p203 = pneg %p135
        $region22: #{tpu_custom_call.1} parent=11 // pred_check_branch
          %205 = sbr.rel (%p203) target = $region24
        $region23: #{tpu_custom_call.1} parent=11 // pred_region
          _
        $region24: #{tpu_custom_call.1} parent=11 // pred_fallthru
          _
        // Predicated region
        $region25: #{tpu_custom_call.1} parent=11 // pred_check
          %p206 = pneg %p156
        $region26: #{tpu_custom_call.1} parent=11 // pred_check_branch
          %208 = sbr.rel (%p206) target = $region28
        $region27: #{tpu_custom_call.1} parent=11 // pred_region
          _
        $region28: #{tpu_custom_call.1} parent=11 // pred_fallthru
          _
      $region12: #{tpu_custom_call.1} parent=5 // pred_fallthru
        _
      %p209 = scmp.lt.s32.totalorder %s20, 2
      // Predicated region
      $region29: #{tpu_custom_call.1} parent=5 // pred_check
        %p210 = pneg %p209
      $region30: #{tpu_custom_call.1} parent=5 // pred_check_branch
        %212 = sbr.rel (%p210) target = $region32
      $region31: #{tpu_custom_call.1} parent=5 // pred_region
        // Predicated region
        $region33: #{tpu_custom_call.1} parent=31 // pred_check
          %p213 = pneg %p40
        $region34: #{tpu_custom_call.1} parent=31 // pred_check_branch
          %215 = sbr.rel (%p213) target = $region36
        $region35: #{tpu_custom_call.1} parent=31 // pred_region
          %p216 = scmp.lt.s32.totalorder %s20, 1
          %s217 = scalar_select %p216, %s20, 1
          %s218 = smul.addr %s217, 2
          %s219 = smul.addr %s218, 4
          %s220 = scalar_lea.vmem %s0, %s219
        $region36: #{tpu_custom_call.1} parent=31 // pred_fallthru
          _
        // Predicated region
        $region37: #{tpu_custom_call.1} parent=31 // pred_check
          %p221 = pneg %p66
        $region38: #{tpu_custom_call.1} parent=31 // pred_check_branch
          %223 = sbr.rel (%p221) target = $region40
        $region39: #{tpu_custom_call.1} parent=31 // pred_region
          %s224 = sand.u32 %s56, 1
          %s225 = scalar_lea.sflag [#allocation4], %s224
          %s226 = sand.u32 %s56, 1
          %s227 = smul.addr %s226, 8
          %s228 = scalar_lea.vmem [#allocation3], %s227
          %230 = vsyncadd %s225, 0
          %s231 = smul.addr %s20, 2
          %s232 = smul.addr %s231, 4
          %s233 = scalar_lea.hbm %s1, %s232
          %s235 = sshll.u32 %s233, 4
          %s236 = int_to_ptr.hbm [resolvable:$true] %s235
          %s237 = sshll.u32 %s228, 4
          %s238 = int_to_ptr.vmem [resolvable:$true] %s237
          %240 = dma.hbm_to_vmem [thread:$0]  %s236, 128, %s238, %s225
        $region40: #{tpu_custom_call.1} parent=31 // pred_fallthru
          _
      $region32: #{tpu_custom_call.1} parent=5 // pred_fallthru
        _
      %p241 = scmp.le.s32.totalorder 1, %s20
      %p242 = scmp.lt.s32.totalorder %s20, 3
      %p243 = pnand %p241, %p242
      %p244 = pneg %p243
      // Predicated region
      $region41: #{tpu_custom_call.1} parent=5 // pred_check
        _
      $region42: #{tpu_custom_call.1} parent=5 // pred_check_branch
        %246 = sbr.rel (%p243) target = $region44
      $region43: #{tpu_custom_call.1} parent=5 // pred_region
        %s247 = ssub.s32 %s20, 1
        %s248 = sand.u32 %s59, 1
        %s249 = scalar_lea.sflag [#allocation4], %s248
        %s250 = sand.u32 %s59, 1
        %s251 = smul.addr %s250, 8
        %s252 = scalar_lea.vmem [#allocation3], %s251
        // Predicated region
        $region45: #{tpu_custom_call.1} parent=43 // pred_check
          %p253 = pneg %p72
        $region46: #{tpu_custom_call.1} parent=43 // pred_check_branch
          %255 = sbr.rel (%p253) target = $region48
        $region47: #{tpu_custom_call.1} parent=43 // pred_region
          %257 = dma.done %s249, 128
        $region48: #{tpu_custom_call.1} parent=43 // pred_fallthru
          _
        %p258 = scmp.lt.s32.totalorder %s25, 1
        %s259 = scalar_select %p258, %s25, 1
        %s260 = smul.addr %s259, 2
        %s261 = smul.addr %s260, 4
        %s262 = scalar_lea.vmem %s0, %s261
        %p263 = pneg %p46
        %p264 = pneg %p43
        %s265 = sand.u32 %s59, 1
        %s266 = scalar_lea.sflag [#allocation4], %s265
        %s267 = sand.u32 %s59, 1
        %s268 = smul.addr %s267, 8
        %s269 = scalar_lea.vmem [#allocation3], %s268
        %p270 = pneg %p72
        %p271 = pneg %p69
        %p272 = pneg %p93
        %p273 = pneg %p90
        %p274 = pneg %p114
        %p275 = pneg %p111
        %p276 = pneg %p135
        %p277 = pneg %p132
        %p278 = pneg %p156
        %p279 = pneg %p153
        %p280 = pneg %p182
        %p281 = pneg %p179
        %s282 = sand.u32 %s169, 1
        %s283 = scalar_lea.sflag [#allocation5], %s282
        %s284 = sand.u32 %s169, 1
        %s285 = smul.addr %s284, 8
        %s286 = scalar_lea.vmem [#allocation6], %s285
        %p287 = scmp.lt.s32.totalorder %s25, 1
        %s288 = scalar_select %p287, %s25, 1
        %s289 = smul.addr %s288, 2
        %s290 = smul.addr %s289, 4
        %s291 = scalar_lea.vmem %s0, %s290
        %v292 = vld [vmem:[%s291] sm:$0xff]
        %v293 = vld [vmem:[%s252] sm:$0xff]
        %v294 = vld [vmem:[%s4] sm:$0xff]
        %v295 = vld [vmem:[%s2] sm:$0xff]
        %297 = vset.pattern.permute.xlu0 0
        %298 = vperm.xlu0 %297, %v294
        %v299 = vpop.permute.xlu0 %298
        %302 = vst [vmem:[#allocation1] ss:$2 sm:$0xff] %v292
        %v303 = vld.sshfl [vmem:[#allocation1] sm:$0xff pattern:$0x75316420]
        %v304 = vld.sshfl [vmem:[#allocation1 + $0x8] sm:$0xff pattern:$0x75316420]
        %vm305 = vcmask 31744
        %v307 = vsel %vm305, %v295, 0
        %vm309 = vcmask 1043456
        %v310 = vsel %vm309, %v303, 0
        %v312 = vsel %vm309, %v304, 0
        %314 = vmatpush.msra.mxu0 0.0
        %315 = vmatpush.msra.mxu0 0.0
        %316 = vmatpush.msra.mxu0 0.0
        %317 = vmatpush.msra.mxu0 0.0
        %318 = vmatpush.msra.mxu0 0.0
        %319 = vmatpush.msra.mxu0 0.0
        %320 = vmatpush.msra.mxu0 0.0
        %321 = vmatpush.msra.mxu0 0.0
        %322 = vmatpush.msra.mxu0 0.0
        %323 = vmatpush.msra.mxu0 0.0
        %324 = vmatpush.msra.mxu0 0.0
        %325 = vmatpush.msra.mxu0 0.0
        %326 = vmatpush.msra.mxu0 0.0
        %327 = vmatpush.msra.mxu0 0.0
        %328 = vmatpush.msra.mxu0 0.0
        %329 = vmatpush.msra.mxu0 %v310
        %330 = vmatmul.f32.gmra.mxu0 %v307
        %v331 = vpop.f32.mrf.mxu0
        %v332 = vadd.f32 %v299, %v331
        %333 = vdwg.mxu0
        %334 = vmatpush.msra.mxu0 0.0
        %335 = vmatpush.msra.mxu0 0.0
        %336 = vmatpush.msra.mxu0 0.0
        %337 = vmatpush.msra.mxu0 0.0
        %338 = vmatpush.msra.mxu0 0.0
        %339 = vmatpush.msra.mxu0 0.0
        %340 = vmatpush.msra.mxu0 0.0
        %341 = vmatpush.msra.mxu0 0.0
        %342 = vmatpush.msra.mxu0 0.0
        %343 = vmatpush.msra.mxu0 0.0
        %344 = vmatpush.msra.mxu0 0.0
        %345 = vmatpush.msra.mxu0 0.0
        %346 = vmatpush.msra.mxu0 0.0
        %347 = vmatpush.msra.mxu0 0.0
        %348 = vmatpush.msra.mxu0 0.0
        %349 = vmatpush.msra.mxu0 %v312
        %350 = vmatmul.f32.gmra.mxu0 %v307
        %v351 = vpop.f32.mrf.mxu0
        %v352 = vadd.f32 %v299, %v351
        %353 = vdwg.mxu0
        %v354 = vld [vmem:[%s3] sm:$0xff]
        %355 = vset.pattern.permute.xlu0 1
        %356 = vperm.xlu0 %355, %v294
        %v357 = vpop.permute.xlu0 %356
        %360 = vst [vmem:[#allocation1] ss:$2 sm:$0xff] %v293
        %v361 = vld.sshfl [vmem:[#allocation1] sm:$0xff pattern:$0x75316420]
        %v362 = vld.sshfl [vmem:[#allocation1 + $0x8] sm:$0xff pattern:$0x75316420]
        %v364 = vsel %vm305, %v354, 0
        %v366 = vsel %vm309, %v361, 0
        %v368 = vsel %vm309, %v362, 0
        %370 = vmatpush.msra.mxu0 0.0
        %371 = vmatpush.msra.mxu0 0.0
        %372 = vmatpush.msra.mxu0 0.0
        %373 = vmatpush.msra.mxu0 0.0
        %374 = vmatpush.msra.mxu0 0.0
        %375 = vmatpush.msra.mxu0 0.0
        %376 = vmatpush.msra.mxu0 0.0
        %377 = vmatpush.msra.mxu0 0.0
        %378 = vmatpush.msra.mxu0 0.0
        %379 = vmatpush.msra.mxu0 0.0
        %380 = vmatpush.msra.mxu0 0.0
        %381 = vmatpush.msra.mxu0 0.0
        %382 = vmatpush.msra.mxu0 0.0
        %383 = vmatpush.msra.mxu0 0.0
        %384 = vmatpush.msra.mxu0 0.0
        %385 = vmatpush.msra.mxu0 %v366
        %386 = vmatmul.f32.gmra.mxu0 %v364
        %v387 = vpop.f32.mrf.mxu0
        %v388 = vadd.f32 %v357, %v387
        %389 = vdwg.mxu0
        %390 = vmatpush.msra.mxu0 0.0
        %391 = vmatpush.msra.mxu0 0.0
        %392 = vmatpush.msra.mxu0 0.0
        %393 = vmatpush.msra.mxu0 0.0
        %394 = vmatpush.msra.mxu0 0.0
        %395 = vmatpush.msra.mxu0 0.0
        %396 = vmatpush.msra.mxu0 0.0
        %397 = vmatpush.msra.mxu0 0.0
        %398 = vmatpush.msra.mxu0 0.0
        %399 = vmatpush.msra.mxu0 0.0
        %400 = vmatpush.msra.mxu0 0.0
        %401 = vmatpush.msra.mxu0 0.0
        %402 = vmatpush.msra.mxu0 0.0
        %403 = vmatpush.msra.mxu0 0.0
        %404 = vmatpush.msra.mxu0 0.0
        %405 = vmatpush.msra.mxu0 %v368
        %406 = vmatmul.f32.gmra.mxu0 %v364
        %v407 = vpop.f32.mrf.mxu0
        %v408 = vadd.f32 %v357, %v407
        %409 = vdwg.mxu0
        %v410 = vadd.f32 %v332, %v352
        %411 = vadd.xlane.f32.xlu0 %v410
        %v412 = vpop.xlane.xlu0 %411
        %v413 = vrot.slane %v412, 4
        %v414 = vadd.f32 %v412, %v413
        %v415 = vrot.slane %v414, 2
        %v416 = vadd.f32 %v414, %v415
        %v417 = vrot.slane %v416, 1
        %v418 = vadd.f32 %v416, %v417
        %s419 = vtos %v418
        %s420 = smul.f32 %s419, 0.00048828125
        %v421 = vmul.f32 %v332, %v332
        %v422 = vmul.f32 %v352, %v352
        %v423 = vadd.f32 %v421, %v422
        %424 = vadd.xlane.f32.xlu0 %v423
        %v425 = vpop.xlane.xlu0 %424
        %v426 = vrot.slane %v425, 4
        %v427 = vadd.f32 %v425, %v426
        %v428 = vrot.slane %v427, 2
        %v429 = vadd.f32 %v427, %v428
        %v430 = vrot.slane %v429, 1
        %v431 = vadd.f32 %v429, %v430
        %s432 = vtos %v431
        %s433 = smul.f32 %s432, 0.00048828125
        %s434 = smul.f32 %s420, %s420
        %s435 = ssub.f32 %s433, %s434
        %s436 = smax.f32 %s435, 0.0
        %v437 = vadd.f32 %v388, %v408
        %438 = vadd.xlane.f32.xlu0 %v437
        %v439 = vpop.xlane.xlu0 %438
        %v440 = vrot.slane %v439, 4
        %v441 = vadd.f32 %v439, %v440
        %v442 = vrot.slane %v441, 2
        %v443 = vadd.f32 %v441, %v442
        %v444 = vrot.slane %v443, 1
        %v445 = vadd.f32 %v443, %v444
        %s446 = vtos %v445
        %s447 = smul.f32 %s446, 0.00048828125
        %v448 = vmul.f32 %v388, %v388
        %v449 = vmul.f32 %v408, %v408
        %v450 = vadd.f32 %v448, %v449
        %451 = vadd.xlane.f32.xlu0 %v450
        %v452 = vpop.xlane.xlu0 %451
        %v453 = vrot.slane %v452, 4
        %v454 = vadd.f32 %v452, %v453
        %v455 = vrot.slane %v454, 2
        %v456 = vadd.f32 %v454, %v455
        %v457 = vrot.slane %v456, 1
        %v458 = vadd.f32 %v456, %v457
        %s459 = vtos %v458
        %s460 = smul.f32 %s459, 0.00048828125
        %s461 = smul.f32 %s447, %s447
        %s462 = ssub.f32 %s460, %s461
        %s463 = smax.f32 %s462, 0.0
        %s464 = sadd.f32 %s436, 1e-05
        %v465 = vstv %s464
        %v466 = vrsqrt.pop %v465
        %v467 = vmul.f32 %v466, %v465
        %v468 = vmul.f32 %v467, %v466
        %v469 = vmul.f32 0.5, %v468
        %v470 = vsub.f32 1.5, %v469
        %v471 = vmul.f32 %v466, %v470
        %vm472 = vweird.f32 %v465
        %vm473 = vweird.f32 %v466
        %vm474 = vmor %vm472, %vm473
        %v475 = vsel %vm474, %v466, %v471
        %s476 = vtos %v475
        %v477 = vstv %s476
        %v478 = vmul.f32 %v477, %v294
        %s479 = sadd.f32 %s463, 1e-05
        %v480 = vstv %s479
        %v481 = vrsqrt.pop %v480
        %v482 = vmul.f32 %v481, %v480
        %v483 = vmul.f32 %v482, %v481
        %v484 = vmul.f32 0.5, %v483
        %v485 = vsub.f32 1.5, %v484
        %v486 = vmul.f32 %v481, %v485
        %vm487 = vweird.f32 %v480
        %vm488 = vweird.f32 %v481
        %vm489 = vmor %vm487, %vm488
        %v490 = vsel %vm489, %v481, %v486
        %s491 = vtos %v490
        %v492 = vstv %s491
        %v493 = vmul.f32 %v492, %v294
        %494 = vrot.lane.b32.xlu0 %v294, 126
        %v495 = vpop.permute.xlu0 %494
        %v497 = vadd.f32 %v294, %v495
        %v498 = vstv %s420
        %v499 = vmul.f32 %v498, %v478
        %501 = vrot.lane.b32.xlu0 %v499, 1
        %v502 = vpop.permute.xlu0 %501
        %v504 = vsub.f32 %v497, %v502
        %v505 = vstv %s447
        %v506 = vmul.f32 %v505, %v493
        %508 = vrot.lane.b32.xlu0 %v506, 127
        %v509 = vpop.permute.xlu0 %508
        %v511 = vsub.f32 %v504, %v509
        %513 = vset.pattern.permute.xlu0 2
        %514 = vperm.xlu0 %513, %v478
        %v515 = vpop.permute.xlu0 %514
        %v517 = vmul.f32 %v332, %v515
        %v518 = vmul.f32 %v352, %v515
        %520 = vset.pattern.permute.xlu0 4
        %521 = vperm.xlu0 %520, %v493
        %v522 = vpop.permute.xlu0 %521
        %v524 = vmul.f32 %v388, %v522
        %v525 = vmul.f32 %v408, %v522
        %v526 = vadd.f32 %v517, %v524
        %v527 = vadd.f32 %v518, %v525
        %529 = vset.pattern.permute.xlu0 3
        %530 = vperm.xlu0 %529, %v511
        %v531 = vpop.permute.xlu0 %530
        %v533 = vadd.f32 %v526, %v531
        %v534 = vadd.f32 %v527, %v531
        %v535 = vmax.f32 %v533, 0.0
        %v536 = vmax.f32 %v534, 0.0
        %537 = vset.pattern.permute.xlu0 6
        %538 = vperm.xlu0 %537, %v294
        %v539 = vpop.permute.xlu0 %538
        %v541 = vmul.f32 %v535, %v539
        %v542 = vmul.f32 %v536, %v539
        %v543 = vrot.slane %v541, 4
        %v544 = vadd.f32 %v541, %v543
        %v545 = vrot.slane %v544, 2
        %v546 = vadd.f32 %v544, %v545
        %v547 = vrot.slane %v546, 1
        %v548 = vadd.f32 %v546, %v547
        %v549 = vrot.slane %v542, 4
        %v550 = vadd.f32 %v542, %v549
        %v551 = vrot.slane %v550, 2
        %v552 = vadd.f32 %v550, %v551
        %v553 = vrot.slane %v552, 1
        %v554 = vadd.f32 %v552, %v553
        %v555 = vld [vmem:[#allocation2] sm:$0x1]
        %s556 = vtos %v555
        %v557 = vstv %s556
        %v558 = vadd.f32 %v548, %v557
        %v559 = vadd.f32 %v554, %v557
        %v560 = vxor.u32 %v558, 2147483648
        %v561 = vxor.u32 %v559, 2147483648
        %v562 = vmul.f32 %v560, 1.442695
        %v563 = vpow.pop %v562
        %v564 = vmul.f32 %v561, 1.442695
        %v565 = vpow.pop %v564
        %v566 = vadd.f32 %v563, 1.0
        %v567 = vadd.f32 %v565, 1.0
        %v568 = vrcp.pop %v566
        %v569 = vmul.f32 %v566, %v568
        %v570 = vsub.f32 1.0, %v569
        %v571 = vmul.f32 %v568, %v570
        %v572 = vadd.f32 %v568, %v571
        %vm573 = vweird.f32 %v566
        %vm574 = vweird.f32 %v568
        %vm575 = vmor %vm573, %vm574
        %v576 = vsel %vm575, %v568, %v572
        %v577 = vand.u32 2147483647, %v566
        %vm578 = vcmp.eq.f32.partialorder %v577, 8.507059e+37
        %v579 = vand.u32 %v566, 2147483648
        %v580 = vor.u32 1.1754944e-38, %v579
        %v581 = vsel %vm578, %v580, %v576
        %v582 = vmul.f32 1.0, %v581
        %v583 = vrcp.pop %v567
        %v584 = vmul.f32 %v567, %v583
        %v585 = vsub.f32 1.0, %v584
        %v586 = vmul.f32 %v583, %v585
        %v587 = vadd.f32 %v583, %v586
        %vm588 = vweird.f32 %v567
        %vm589 = vweird.f32 %v583
        %vm590 = vmor %vm588, %vm589
        %v591 = vsel %vm590, %v583, %v587
        %v592 = vand.u32 2147483647, %v567
        %vm593 = vcmp.eq.f32.partialorder %v592, 8.507059e+37
        %v594 = vand.u32 %v567, 2147483648
        %v595 = vor.u32 1.1754944e-38, %v594
        %v596 = vsel %vm593, %v595, %v591
        %v597 = vmul.f32 1.0, %v596
        %v600 = vrot.slane %v597, 4
        %v601 = vsel %vm309, %v582, %v600
        %v603 = vmul.f32 %v292, %v601
        %604 = vst [vmem:[%s286] sm:$0xff] %v603
        %s605 = sand.u32 %s169, 1
        %s606 = scalar_lea.sflag [#allocation5], %s605
        %s607 = sand.u32 %s169, 1
        %s608 = smul.addr %s607, 8
        %s609 = scalar_lea.vmem [#allocation6], %s608
        // Predicated region
        $region49: #{tpu_custom_call.1} parent=43 // pred_check
          %p610 = pneg %p179
        $region50: #{tpu_custom_call.1} parent=43 // pred_check_branch
          %612 = sbr.rel (%p610) target = $region52
        $region51: #{tpu_custom_call.1} parent=43 // pred_region
          %614 = vsyncadd %s606, 0
          %s615 = smul.addr %s25, 2
          %s616 = smul.addr %s615, 4
          %s617 = scalar_lea.hbm %s6, %s616
          %s619 = sshll.u32 %s609, 4
          %s620 = int_to_ptr.vmem [resolvable:$true] %s619
          %s621 = sshll.u32 %s617, 4
          %s622 = int_to_ptr.hbm [resolvable:$true] %s621
          %624 = dma.vmem_to_hbm [thread:$0]  %s620, 128, %s622, %s606
        $region52: #{tpu_custom_call.1} parent=43 // pred_fallthru
          _
      $region44: #{tpu_custom_call.1} parent=5 // pred_fallthru
        _
      %p625 = scmp.le.s32.totalorder 2, %s20
      // Predicated region
      $region53: #{tpu_custom_call.1} parent=5 // pred_check
        %p626 = pneg %p625
      $region54: #{tpu_custom_call.1} parent=5 // pred_check_branch
        %628 = sbr.rel (%p626) target = $region56
      $region55: #{tpu_custom_call.1} parent=5 // pred_region
        %s629 = ssub.s32 %s20, 2
        // Predicated region
        $region57: #{tpu_custom_call.1} parent=55 // pred_check
          %p630 = pneg %p185
        $region58: #{tpu_custom_call.1} parent=55 // pred_check_branch
          %632 = sbr.rel (%p630) target = $region60
        $region59: #{tpu_custom_call.1} parent=55 // pred_region
          %s633 = sand.u32 %s170, 1
          %s634 = scalar_lea.sflag [#allocation5], %s633
          %s635 = sand.u32 %s170, 1
          %s636 = smul.addr %s635, 8
          %s637 = scalar_lea.vmem [#allocation6], %s636
          %639 = dma.done %s634, 128
        $region60: #{tpu_custom_call.1} parent=55 // pred_fallthru
          _
      $region56: #{tpu_custom_call.1} parent=5 // pred_fallthru
        _
    $region6: #{tpu_custom_call.1} parent=1 // loop_footer
      %s24 = sadd.s32 1, %s20
    $region7: #{tpu_custom_call.1} parent=1 // loop_footer_branch
      %19 = sbr.rel target = $region3
    $region8: #{tpu_custom_call.1} parent=1 // loop_exit
      _
    %640 = vsyncpa [#allocation4], 1
    %s641 = scalar_lea.sflag [#allocation4], 1
    %642 = vsyncpa %s641, 1
    %643 = vsyncpa [#allocation5], 1
    %s644 = scalar_lea.sflag [#allocation5], 1
    %645 = vsyncpa %s644, 1

</llo_original>
